<compile_context>
chip_gen: v7x
topology: tpu7x:2x2x1
jax: 0.10.0
libtpu: 0.0.40
codegen_flags: <defaults>
</compile_context>

<pallas_src>
import functools

import jax
import jax.numpy as jnp
from jax import lax
from jax.experimental import pallas as pl
from jax.experimental.pallas import tpu as pltpu


def _ceil_to(v, m):
    return ((v + m - 1) // m) * m


# ----------------------------------------------------------------------------
# Primary kernel: lane-dense input DMA, in-register (gw, pw) regroup.
# ----------------------------------------------------------------------------
def _kernel_lane_dense(x_ref, o_ref, *, C, gh, gw, ph, pw):
    """x_ref: (Bt, C, gh, ph, W) with W = gw*pw (lane dense).
    o_ref: (Bt, gh, gw, C*ph*pw).
    """
    Bt = o_ref.shape[0]
    plen = ph * pw

    def body(t, carry):
        bb = t // gh
        gi = t % gh
        for c in range(C):  # small, static
            slab = x_ref[bb, c, gi]                  # (ph, W)   lane-dense load
            # In-register regroup (ph, gw*pw) -> (gw, ph*pw), torch-unfold order
            # (column index = i*pw + j).  Kept to layout-friendly steps:
            #   2-D transpose  -> leading-dim split -> minor transpose -> merge.
            t2 = jnp.transpose(slab)                 # (W, ph)
            t2 = t2.reshape(gw, pw, ph)              # leading split, minor dim kept
            t2 = jnp.swapaxes(t2, 1, 2)              # (gw, ph, pw)
            chan = t2.reshape(gw, plen)              # (gw, ph*pw)
            # One store per channel; offset c*plen is 128-lane aligned whenever
            # plen % 128 == 0 (unmasked vst); otherwise masked but still correct.
            o_ref[pl.ds(bb, 1), pl.ds(gi, 1), :, pl.ds(c * plen, plen)] = (
                chan[None, None]
            )
        return carry

    lax.fori_loop(0, Bt * gh, body, None, unroll=(Bt * gh <= 4))


# ----------------------------------------------------------------------------
# Fallback kernel (previously validated): BlockSpec DMA does the (gw, pw)
# regroup (lane-padded input buffer); concat along lanes inside the kernel.
# ----------------------------------------------------------------------------
def _kernel_padded(x_ref, o_ref, *, C, gh, gw, ph, pw):
    """x_ref: (Bt, C, H, gw, pw).  o_ref: (Bt, gh, gw, C*ph*pw)."""
    Bt = o_ref.shape[0]
    plen = ph * pw

    for bb in range(Bt):  # small, static

        def body(gi, carry, bb=bb):
            row0 = pl.multiple_of(gi * ph, ph)
            for c in range(C):
                slab = x_ref[bb, c, pl.ds(row0, ph), :, :]          # (ph, gw, pw)
                chan = jnp.concatenate(
                    [slab[i] for i in range(ph)], axis=-1
                )                                                    # (gw, ph*pw)
                # Per-channel store caps vreg liveness vs. full-row assembly.
                o_ref[bb, pl.ds(gi, 1), :, pl.ds(c * plen, plen)] = chan[None]
            return carry

        lax.fori_loop(0, gh, body, None, unroll=(gh <= 4))


# ----------------------------------------------------------------------------
# Planning: Bt (images per grid step) and VMEM limit from *padded* block bytes.
# ----------------------------------------------------------------------------
def _plan(B, C, H, W, ph, pw, itemsize, images_per_block, *, lane_dense):
    gh, gw = H // ph, W // pw
    D = C * ph * pw
    # Padded VMEM bytes per image for the chosen layout ((8,128) tiling on the
    # last two block dims; heuristic, slightly conservative for packed dtypes).
    if lane_dense:
        in_img = C * gh * _ceil_to(ph, 8) * _ceil_to(W, 128) * itemsize
    else:
        in_img = C * H * _ceil_to(gw, 8) * _ceil_to(pw, 128) * itemsize
    out_img = gh * _ceil_to(gw, 8) * _ceil_to(D, 128) * itemsize
    per_img = 2 * (in_img + out_img)          # double-buffered input + output

    budget = 28 * 1024 * 1024                 # safe on v7x (64 MiB physical)
    if images_per_block is not None:
        Bt = int(images_per_block)
        assert B % Bt == 0, "images_per_block must divide batch"
    else:
        Bt = 1
        for cand in range(2, min(B, 8) + 1):
            if B % cand != 0:
                continue
            if B // cand < 2:                 # keep >= 2 grid steps (dual-TC)
                break
            if cand * per_img > budget:
                break
            Bt = cand

    vmem = int(min(max(Bt * per_img + (4 << 20), 24 << 20), 64 << 20))
    return Bt, vmem


# ----------------------------------------------------------------------------
# pallas_call builders (cached so repeated calls reuse the compiled kernel).
# ----------------------------------------------------------------------------
@functools.lru_cache(maxsize=None)
def _build_lane_dense(B, C, H, W, ph, pw, dtype_name, Bt, vmem_bytes):
    gh, gw = H // ph, W // pw
    D = C * ph * pw
    dtype = jnp.dtype(dtype_name)
    kernel = functools.partial(_kernel_lane_dense, C=C, gh=gh, gw=gw, ph=ph, pw=pw)
    call = pl.pallas_call(
        kernel,
        out_shape=jax.ShapeDtypeStruct((B, gh, gw, D), dtype),
        grid_spec=pltpu.PrefetchScalarGridSpec(
            num_scalar_prefetch=0,
            grid=(B // Bt,),
            in_specs=[
                pl.BlockSpec((Bt, C, gh, ph, W), lambda b: (b, 0, 0, 0, 0))
            ],
            out_specs=pl.BlockSpec((Bt, gh, gw, D), lambda b: (b, 0, 0, 0)),
        ),
        compiler_params=pltpu.CompilerParams(
            dimension_semantics=("parallel",),
            vmem_limit_bytes=vmem_bytes,
        ),
    )

    def fwd(x):
        # Free row-major view: W stays on the lane axis (lane-dense DMA).
        return call(x.reshape(B, C, gh, ph, W))

    return fwd


@functools.lru_cache(maxsize=None)
def _build_padded(B, C, H, W, ph, pw, dtype_name, Bt, vmem_bytes):
    gh, gw = H // ph, W // pw
    D = C * ph * pw
    dtype = jnp.dtype(dtype_name)
    kernel = functools.partial(_kernel_padded, C=C, gh=gh, gw=gw, ph=ph, pw=pw)
    call = pl.pallas_call(
        kernel,
        out_shape=jax.ShapeDtypeStruct((B, gh, gw, D), dtype),
        grid_spec=pltpu.PrefetchScalarGridSpec(
            num_scalar_prefetch=0,
            grid=(B // Bt,),
            in_specs=[
                pl.BlockSpec((Bt, C, H, gw, pw), lambda b: (b, 0, 0, 0, 0))
            ],
            out_specs=pl.BlockSpec((Bt, gh, gw, D), lambda b: (b, 0, 0, 0)),
        ),
        compiler_params=pltpu.CompilerParams(
            dimension_semantics=("parallel",),
            vmem_limit_bytes=vmem_bytes,
        ),
    )

    def fwd(x):
        # Free row-major view: W split into (gw, pw); DMA does the regroup.
        return call(x.reshape(B, C, H, gw, pw))

    return fwd


@functools.lru_cache(maxsize=None)
def _lane_dense_supported(B, C, H, W, ph, pw, dtype_name, Bt, vmem_bytes):
    """Probe once (per config) whether Mosaic lowers the in-register regroup."""
    try:
        fwd = _build_lane_dense(B, C, H, W, ph, pw, dtype_name, Bt, vmem_bytes)
        jax.block_until_ready(fwd(jnp.zeros((B, C, H, W), jnp.dtype(dtype_name))))
        return True
    except Exception:  # lowering gap -> use the validated fallback layout
        return False


# ----------------------------------------------------------------------------
# Public wrapper (PatchExtractor.forward equivalent).
# ----------------------------------------------------------------------------
def patch_extractor(x, patch_h, patch_w, *, images_per_block=None):
    """Pallas equivalent of PatchExtractor.forward for NCHW input."""
    B, C, H, W = x.shape
    assert H % patch_h == 0 and W % patch_w == 0, "H/W must be multiples of patch size"
    gh, gw = H // patch_h, W // patch_w
    N = gh * gw
    D = C * patch_h * patch_w
    dtype_name = jnp.dtype(x.dtype).name
    itemsize = jnp.dtype(x.dtype).itemsize

    bt_d, vm_d = _plan(B, C, H, W, patch_h, patch_w, itemsize,
                       images_per_block, lane_dense=True)
    if _lane_dense_supported(B, C, H, W, patch_h, patch_w, dtype_name, bt_d, vm_d):
        fwd = _build_lane_dense(B, C, H, W, patch_h, patch_w, dtype_name, bt_d, vm_d)
    else:
        bt_p, vm_p = _plan(B, C, H, W, patch_h, patch_w, itemsize,
                           images_per_block, lane_dense=False)
        fwd = _build_padded(B, C, H, W, patch_h, patch_w, dtype_name, bt_p, vm_p)

    out4 = fwd(x)                         # (B, gh, gw, D)
    return out4.reshape(B, N, D)          # free (gh, gw) -> N merge


def patch_extractor_ref(x, ph, pw):
    """Pure-JAX reference matching the PyTorch unfold semantics."""
    B, C, H, W = x.shape
    gh, gw = H // ph, W // pw
    x = jnp.moveaxis(x, 1, 3)                      # B, H, W, C
    x = x.reshape(B, gh, ph, gw, pw, C)
    x = jnp.transpose(x, (0, 1, 3, 5, 2, 4))       # B, gh, gw, C, ph, pw
    return x.reshape(B, gh * gw, C * ph * pw)


if __name__ == "__main__":
    # Small shapes consistent with the module: B=2, C=4, H=W=16, patch 4x4.
    B, C, H, W = 2, 4, 16, 16
    ph, pw = 4, 4

    key = jax.random.PRNGKey(0)
    x = jax.random.normal(key, (B, C, H, W), dtype=jnp.float32)

    out = patch_extractor(x, ph, pw)
    out = jax.block_until_ready(out)

    ref = patch_extractor_ref(x, ph, pw)
    assert out.shape == (B, (H // ph) * (W // pw), C * ph * pw), out.shape
    assert jnp.allclose(out, ref), "Pallas output mismatch vs reference"

    print("KERNEL_OK")
</pallas_src>

<mosaic_0001>
module attributes {stable_mosaic.version = 11 : i64} {
  func.func @_kernel_padded(%arg0: i32, %arg1: memref<1x4x16x4x4xf32, #tpu.memory_space<vmem>>, %arg2: memref<1x4x4x64xf32, #tpu.memory_space<vmem>>) attributes {dimension_semantics = [#tpu.dimension_semantics<parallel>], iteration_bounds = array<i64: 2>, scalar_prefetch = 0 : i64, scratch_operands = 0 : i64, tpu.core_type = #tpu.core_type<tc>, window_params = [{transform_indices = @transform_0, window_bounds = array<i64: 1, 4, 16, 4, 4>}, {transform_indices = @transform_1, window_bounds = array<i64: 1, 4, 4, 64>}]} {
    %c0_i32 = arith.constant 0 : i32
    %c4_i32 = arith.constant 4 : i32
    %0 = arith.muli %c0_i32, %c4_i32 : i32
    %1 = tpu.assume_multiple %0, 4 : i32
    %c0 = arith.constant 0 : index
    %c0_0 = arith.constant 0 : index
    %2 = arith.index_cast %1 : i32 to index
    %c0_1 = arith.constant 0 : index
    %c0_2 = arith.constant 0 : index
    %3 = vector.load %arg1[%c0, %c0_0, %2, %c0_1, %c0_2] : memref<1x4x16x4x4xf32, #tpu.memory_space<vmem>>, vector<1x1x4x4x4xf32>
    %4 = vector.shape_cast %3 : vector<1x1x4x4x4xf32> to vector<4x4x4xf32>
    %5 = vector.extract_strided_slice %4 {offsets = [0, 0, 0], sizes = [1, 4, 4], strides = [1, 1, 1]} : vector<4x4x4xf32> to vector<1x4x4xf32>
    %6 = vector.shape_cast %5 : vector<1x4x4xf32> to vector<4x4xf32>
    %7 = vector.extract_strided_slice %4 {offsets = [1, 0, 0], sizes = [1, 4, 4], strides = [1, 1, 1]} : vector<4x4x4xf32> to vector<1x4x4xf32>
    %8 = vector.shape_cast %7 : vector<1x4x4xf32> to vector<4x4xf32>
    %9 = vector.extract_strided_slice %4 {offsets = [2, 0, 0], sizes = [1, 4, 4], strides = [1, 1, 1]} : vector<4x4x4xf32> to vector<1x4x4xf32>
    %10 = vector.shape_cast %9 : vector<1x4x4xf32> to vector<4x4xf32>
    %11 = vector.extract_strided_slice %4 {offsets = [3, 0, 0], sizes = [1, 4, 4], strides = [1, 1, 1]} : vector<4x4x4xf32> to vector<1x4x4xf32>
    %12 = vector.shape_cast %11 : vector<1x4x4xf32> to vector<4x4xf32>
    %13 = tpu.concatenate %6, %8, %10, %12 in 1 : vector<4x4xf32>, vector<4x4xf32>, vector<4x4xf32>, vector<4x4xf32> -> vector<4x16xf32>
    %14 = vector.shape_cast %13 : vector<4x16xf32> to vector<1x4x16xf32>
    %c0_3 = arith.constant 0 : index
    %15 = arith.index_cast %c0_i32 : i32 to index
    %c0_4 = arith.constant 0 : index
    %c0_5 = arith.constant 0 : index
    %16 = vector.load %arg2[%c0_3, %15, %c0_4, %c0_5] : memref<1x4x4x64xf32, #tpu.memory_space<vmem>>, vector<1x1x4x16xf32>
    %17 = vector.shape_cast %16 : vector<1x1x4x16xf32> to vector<1x4x16xf32>
    %18 = vector.shape_cast %14 : vector<1x4x16xf32> to vector<1x1x4x16xf32>
    tpu.vector_store %arg2[%c0_3, %15, %c0_4, %c0_5], %18 {strides = array<i32>} : memref<1x4x4x64xf32, #tpu.memory_space<vmem>>, vector<1x1x4x16xf32>,
    %c0_6 = arith.constant 0 : index
    %c1 = arith.constant 1 : index
    %19 = arith.index_cast %1 : i32 to index
    %c0_7 = arith.constant 0 : index
    %c0_8 = arith.constant 0 : index
    %20 = vector.load %arg1[%c0_6, %c1, %19, %c0_7, %c0_8] : memref<1x4x16x4x4xf32, #tpu.memory_space<vmem>>, vector<1x1x4x4x4xf32>
    %21 = vector.shape_cast %20 : vector<1x1x4x4x4xf32> to vector<4x4x4xf32>
    %22 = vector.extract_strided_slice %21 {offsets = [0, 0, 0], sizes = [1, 4, 4], strides = [1, 1, 1]} : vector<4x4x4xf32> to vector<1x4x4xf32>
    %23 = vector.shape_cast %22 : vector<1x4x4xf32> to vector<4x4xf32>
    %24 = vector.extract_strided_slice %21 {offsets = [1, 0, 0], sizes = [1, 4, 4], strides = [1, 1, 1]} : vector<4x4x4xf32> to vector<1x4x4xf32>
    %25 = vector.shape_cast %24 : vector<1x4x4xf32> to vector<4x4xf32>
    %26 = vector.extract_strided_slice %21 {offsets = [2, 0, 0], sizes = [1, 4, 4], strides = [1, 1, 1]} : vector<4x4x4xf32> to vector<1x4x4xf32>
    %27 = vector.shape_cast %26 : vector<1x4x4xf32> to vector<4x4xf32>
    %28 = vector.extract_strided_slice %21 {offsets = [3, 0, 0], sizes = [1, 4, 4], strides = [1, 1, 1]} : vector<4x4x4xf32> to vector<1x4x4xf32>
    %29 = vector.shape_cast %28 : vector<1x4x4xf32> to vector<4x4xf32>
    %30 = tpu.concatenate %23, %25, %27, %29 in 1 : vector<4x4xf32>, vector<4x4xf32>, vector<4x4xf32>, vector<4x4xf32> -> vector<4x16xf32>
    %31 = vector.shape_cast %30 : vector<4x16xf32> to vector<1x4x16xf32>
    %c0_9 = arith.constant 0 : index
    %32 = arith.index_cast %c0_i32 : i32 to index
    %c0_10 = arith.constant 0 : index
    %c16 = arith.constant 16 : index
    %33 = vector.load %arg2[%c0_9, %32, %c0_10, %c16] : memref<1x4x4x64xf32, #tpu.memory_space<vmem>>, vector<1x1x4x16xf32>
    %34 = vector.shape_cast %33 : vector<1x1x4x16xf32> to vector<1x4x16xf32>
    %35 = vector.shape_cast %31 : vector<1x4x16xf32> to vector<1x1x4x16xf32>
    tpu.vector_store %arg2[%c0_9, %32, %c0_10, %c16], %35 {strides = array<i32>} : memref<1x4x4x64xf32, #tpu.memory_space<vmem>>, vector<1x1x4x16xf32>,
    %c0_11 = arith.constant 0 : index
    %c2 = arith.constant 2 : index
    %36 = arith.index_cast %1 : i32 to index
    %c0_12 = arith.constant 0 : index
    %c0_13 = arith.constant 0 : index
    %37 = vector.load %arg1[%c0_11, %c2, %36, %c0_12, %c0_13] : memref<1x4x16x4x4xf32, #tpu.memory_space<vmem>>, vector<1x1x4x4x4xf32>
    %38 = vector.shape_cast %37 : vector<1x1x4x4x4xf32> to vector<4x4x4xf32>
    %39 = vector.extract_strided_slice %38 {offsets = [0, 0, 0], sizes = [1, 4, 4], strides = [1, 1, 1]} : vector<4x4x4xf32> to vector<1x4x4xf32>
    %40 = vector.shape_cast %39 : vector<1x4x4xf32> to vector<4x4xf32>
    %41 = vector.extract_strided_slice %38 {offsets = [1, 0, 0], sizes = [1, 4, 4], strides = [1, 1, 1]} : vector<4x4x4xf32> to vector<1x4x4xf32>
    %42 = vector.shape_cast %41 : vector<1x4x4xf32> to vector<4x4xf32>
    %43 = vector.extract_strided_slice %38 {offsets = [2, 0, 0], sizes = [1, 4, 4], strides = [1, 1, 1]} : vector<4x4x4xf32> to vector<1x4x4xf32>
    %44 = vector.shape_cast %43 : vector<1x4x4xf32> to vector<4x4xf32>
    %45 = vector.extract_strided_slice %38 {offsets = [3, 0, 0], sizes = [1, 4, 4], strides = [1, 1, 1]} : vector<4x4x4xf32> to vector<1x4x4xf32>
    %46 = vector.shape_cast %45 : vector<1x4x4xf32> to vector<4x4xf32>
    %47 = tpu.concatenate %40, %42, %44, %46 in 1 : vector<4x4xf32>, vector<4x4xf32>, vector<4x4xf32>, vector<4x4xf32> -> vector<4x16xf32>
    %48 = vector.shape_cast %47 : vector<4x16xf32> to vector<1x4x16xf32>
    %c0_14 = arith.constant 0 : index
    %49 = arith.index_cast %c0_i32 : i32 to index
    %c0_15 = arith.constant 0 : index
    %c32 = arith.constant 32 : index
    %50 = vector.load %arg2[%c0_14, %49, %c0_15, %c32] : memref<1x4x4x64xf32, #tpu.memory_space<vmem>>, vector<1x1x4x16xf32>
    %51 = vector.shape_cast %50 : vector<1x1x4x16xf32> to vector<1x4x16xf32>
    %52 = vector.shape_cast %48 : vector<1x4x16xf32> to vector<1x1x4x16xf32>
    tpu.vector_store %arg2[%c0_14, %49, %c0_15, %c32], %52 {strides = array<i32>} : memref<1x4x4x64xf32, #tpu.memory_space<vmem>>, vector<1x1x4x16xf32>,
    %c0_16 = arith.constant 0 : index
    %c3 = arith.constant 3 : index
    %53 = arith.index_cast %1 : i32 to index
    %c0_17 = arith.constant 0 : index
    %c0_18 = arith.constant 0 : index
    %54 = vector.load %arg1[%c0_16, %c3, %53, %c0_17, %c0_18] : memref<1x4x16x4x4xf32, #tpu.memory_space<vmem>>, vector<1x1x4x4x4xf32>
    %55 = vector.shape_cast %54 : vector<1x1x4x4x4xf32> to vector<4x4x4xf32>
    %56 = vector.extract_strided_slice %55 {offsets = [0, 0, 0], sizes = [1, 4, 4], strides = [1, 1, 1]} : vector<4x4x4xf32> to vector<1x4x4xf32>
    %57 = vector.shape_cast %56 : vector<1x4x4xf32> to vector<4x4xf32>
    %58 = vector.extract_strided_slice %55 {offsets = [1, 0, 0], sizes = [1, 4, 4], strides = [1, 1, 1]} : vector<4x4x4xf32> to vector<1x4x4xf32>
    %59 = vector.shape_cast %58 : vector<1x4x4xf32> to vector<4x4xf32>
    %60 = vector.extract_strided_slice %55 {offsets = [2, 0, 0], sizes = [1, 4, 4], strides = [1, 1, 1]} : vector<4x4x4xf32> to vector<1x4x4xf32>
    %61 = vector.shape_cast %60 : vector<1x4x4xf32> to vector<4x4xf32>
    %62 = vector.extract_strided_slice %55 {offsets = [3, 0, 0], sizes = [1, 4, 4], strides = [1, 1, 1]} : vector<4x4x4xf32> to vector<1x4x4xf32>
    %63 = vector.shape_cast %62 : vector<1x4x4xf32> to vector<4x4xf32>
    %64 = tpu.concatenate %57, %59, %61, %63 in 1 : vector<4x4xf32>, vector<4x4xf32>, vector<4x4xf32>, vector<4x4xf32> -> vector<4x16xf32>
    %65 = vector.shape_cast %64 : vector<4x16xf32> to vector<1x4x16xf32>
    %c0_19 = arith.constant 0 : index
    %66 = arith.index_cast %c0_i32 : i32 to index
    %c0_20 = arith.constant 0 : index
    %c48 = arith.constant 48 : index
    %67 = vector.load %arg2[%c0_19, %66, %c0_20, %c48] : memref<1x4x4x64xf32, #tpu.memory_space<vmem>>, vector<1x1x4x16xf32>
    %68 = vector.shape_cast %67 : vector<1x1x4x16xf32> to vector<1x4x16xf32>
    %69 = vector.shape_cast %65 : vector<1x4x16xf32> to vector<1x1x4x16xf32>
    tpu.vector_store %arg2[%c0_19, %66, %c0_20, %c48], %69 {strides = array<i32>} : memref<1x4x4x64xf32, #tpu.memory_space<vmem>>, vector<1x1x4x16xf32>,
    %c1_i32 = arith.constant 1 : i32
    %c4_i32_21 = arith.constant 4 : i32
    %70 = arith.muli %c1_i32, %c4_i32_21 : i32
    %71 = tpu.assume_multiple %70, 4 : i32
    %c0_22 = arith.constant 0 : index
    %c0_23 = arith.constant 0 : index
    %72 = arith.index_cast %71 : i32 to index
    %c0_24 = arith.constant 0 : index
    %c0_25 = arith.constant 0 : index
    %73 = vector.load %arg1[%c0_22, %c0_23, %72, %c0_24, %c0_25] : memref<1x4x16x4x4xf32, #tpu.memory_space<vmem>>, vector<1x1x4x4x4xf32>
    %74 = vector.shape_cast %73 : vector<1x1x4x4x4xf32> to vector<4x4x4xf32>
    %75 = vector.extract_strided_slice %74 {offsets = [0, 0, 0], sizes = [1, 4, 4], strides = [1, 1, 1]} : vector<4x4x4xf32> to vector<1x4x4xf32>
    %76 = vector.shape_cast %75 : vector<1x4x4xf32> to vector<4x4xf32>
    %77 = vector.extract_strided_slice %74 {offsets = [1, 0, 0], sizes = [1, 4, 4], strides = [1, 1, 1]} : vector<4x4x4xf32> to vector<1x4x4xf32>
    %78 = vector.shape_cast %77 : vector<1x4x4xf32> to vector<4x4xf32>
    %79 = vector.extract_strided_slice %74 {offsets = [2, 0, 0], sizes = [1, 4, 4], strides = [1, 1, 1]} : vector<4x4x4xf32> to vector<1x4x4xf32>
    %80 = vector.shape_cast %79 : vector<1x4x4xf32> to vector<4x4xf32>
    %81 = vector.extract_strided_slice %74 {offsets = [3, 0, 0], sizes = [1, 4, 4], strides = [1, 1, 1]} : vector<4x4x4xf32> to vector<1x4x4xf32>
    %82 = vector.shape_cast %81 : vector<1x4x4xf32> to vector<4x4xf32>
    %83 = tpu.concatenate %76, %78, %80, %82 in 1 : vector<4x4xf32>, vector<4x4xf32>, vector<4x4xf32>, vector<4x4xf32> -> vector<4x16xf32>
    %84 = vector.shape_cast %83 : vector<4x16xf32> to vector<1x4x16xf32>
    %c0_26 = arith.constant 0 : index
    %85 = arith.index_cast %c1_i32 : i32 to index
    %c0_27 = arith.constant 0 : index
    %c0_28 = arith.constant 0 : index
    %86 = vector.load %arg2[%c0_26, %85, %c0_27, %c0_28] : memref<1x4x4x64xf32, #tpu.memory_space<vmem>>, vector<1x1x4x16xf32>
    %87 = vector.shape_cast %86 : vector<1x1x4x16xf32> to vector<1x4x16xf32>
    %88 = vector.shape_cast %84 : vector<1x4x16xf32> to vector<1x1x4x16xf32>
    tpu.vector_store %arg2[%c0_26, %85, %c0_27, %c0_28], %88 {strides = array<i32>} : memref<1x4x4x64xf32, #tpu.memory_space<vmem>>, vector<1x1x4x16xf32>,
    %c0_29 = arith.constant 0 : index
    %c1_30 = arith.constant 1 : index
    %89 = arith.index_cast %71 : i32 to index
    %c0_31 = arith.constant 0 : index
    %c0_32 = arith.constant 0 : index
    %90 = vector.load %arg1[%c0_29, %c1_30, %89, %c0_31, %c0_32] : memref<1x4x16x4x4xf32, #tpu.memory_space<vmem>>, vector<1x1x4x4x4xf32>
    %91 = vector.shape_cast %90 : vector<1x1x4x4x4xf32> to vector<4x4x4xf32>
    %92 = vector.extract_strided_slice %91 {offsets = [0, 0, 0], sizes = [1, 4, 4], strides = [1, 1, 1]} : vector<4x4x4xf32> to vector<1x4x4xf32>
    %93 = vector.shape_cast %92 : vector<1x4x4xf32> to vector<4x4xf32>
    %94 = vector.extract_strided_slice %91 {offsets = [1, 0, 0], sizes = [1, 4, 4], strides = [1, 1, 1]} : vector<4x4x4xf32> to vector<1x4x4xf32>
    %95 = vector.shape_cast %94 : vector<1x4x4xf32> to vector<4x4xf32>
    %96 = vector.extract_strided_slice %91 {offsets = [2, 0, 0], sizes = [1, 4, 4], strides = [1, 1, 1]} : vector<4x4x4xf32> to vector<1x4x4xf32>
    %97 = vector.shape_cast %96 : vector<1x4x4xf32> to vector<4x4xf32>
    %98 = vector.extract_strided_slice %91 {offsets = [3, 0, 0], sizes = [1, 4, 4], strides = [1, 1, 1]} : vector<4x4x4xf32> to vector<1x4x4xf32>
    %99 = vector.shape_cast %98 : vector<1x4x4xf32> to vector<4x4xf32>
    %100 = tpu.concatenate %93, %95, %97, %99 in 1 : vector<4x4xf32>, vector<4x4xf32>, vector<4x4xf32>, vector<4x4xf32> -> vector<4x16xf32>
    %101 = vector.shape_cast %100 : vector<4x16xf32> to vector<1x4x16xf32>
    %c0_33 = arith.constant 0 : index
    %102 = arith.index_cast %c1_i32 : i32 to index
    %c0_34 = arith.constant 0 : index
    %c16_35 = arith.constant 16 : index
    %103 = vector.load %arg2[%c0_33, %102, %c0_34, %c16_35] : memref<1x4x4x64xf32, #tpu.memory_space<vmem>>, vector<1x1x4x16xf32>
    %104 = vector.shape_cast %103 : vector<1x1x4x16xf32> to vector<1x4x16xf32>
    %105 = vector.shape_cast %101 : vector<1x4x16xf32> to vector<1x1x4x16xf32>
    tpu.vector_store %arg2[%c0_33, %102, %c0_34, %c16_35], %105 {strides = array<i32>} : memref<1x4x4x64xf32, #tpu.memory_space<vmem>>, vector<1x1x4x16xf32>,
    %c0_36 = arith.constant 0 : index
    %c2_37 = arith.constant 2 : index
    %106 = arith.index_cast %71 : i32 to index
    %c0_38 = arith.constant 0 : index
    %c0_39 = arith.constant 0 : index
    %107 = vector.load %arg1[%c0_36, %c2_37, %106, %c0_38, %c0_39] : memref<1x4x16x4x4xf32, #tpu.memory_space<vmem>>, vector<1x1x4x4x4xf32>
    %108 = vector.shape_cast %107 : vector<1x1x4x4x4xf32> to vector<4x4x4xf32>
    %109 = vector.extract_strided_slice %108 {offsets = [0, 0, 0], sizes = [1, 4, 4], strides = [1, 1, 1]} : vector<4x4x4xf32> to vector<1x4x4xf32>
    %110 = vector.shape_cast %109 : vector<1x4x4xf32> to vector<4x4xf32>
    %111 = vector.extract_strided_slice %108 {offsets = [1, 0, 0], sizes = [1, 4, 4], strides = [1, 1, 1]} : vector<4x4x4xf32> to vector<1x4x4xf32>
    %112 = vector.shape_cast %111 : vector<1x4x4xf32> to vector<4x4xf32>
    %113 = vector.extract_strided_slice %108 {offsets = [2, 0, 0], sizes = [1, 4, 4], strides = [1, 1, 1]} : vector<4x4x4xf32> to vector<1x4x4xf32>
    %114 = vector.shape_cast %113 : vector<1x4x4xf32> to vector<4x4xf32>
    %115 = vector.extract_strided_slice %108 {offsets = [3, 0, 0], sizes = [1, 4, 4], strides = [1, 1, 1]} : vector<4x4x4xf32> to vector<1x4x4xf32>
    %116 = vector.shape_cast %115 : vector<1x4x4xf32> to vector<4x4xf32>
    %117 = tpu.concatenate %110, %112, %114, %116 in 1 : vector<4x4xf32>, vector<4x4xf32>, vector<4x4xf32>, vector<4x4xf32> -> vector<4x16xf32>
    %118 = vector.shape_cast %117 : vector<4x16xf32> to vector<1x4x16xf32>
    %c0_40 = arith.constant 0 : index
    %119 = arith.index_cast %c1_i32 : i32 to index
    %c0_41 = arith.constant 0 : index
    %c32_42 = arith.constant 32 : index
    %120 = vector.load %arg2[%c0_40, %119, %c0_41, %c32_42] : memref<1x4x4x64xf32, #tpu.memory_space<vmem>>, vector<1x1x4x16xf32>
    %121 = vector.shape_cast %120 : vector<1x1x4x16xf32> to vector<1x4x16xf32>
    %122 = vector.shape_cast %118 : vector<1x4x16xf32> to vector<1x1x4x16xf32>
    tpu.vector_store %arg2[%c0_40, %119, %c0_41, %c32_42], %122 {strides = array<i32>} : memref<1x4x4x64xf32, #tpu.memory_space<vmem>>, vector<1x1x4x16xf32>,
    %c0_43 = arith.constant 0 : index
    %c3_44 = arith.constant 3 : index
    %123 = arith.index_cast %71 : i32 to index
    %c0_45 = arith.constant 0 : index
    %c0_46 = arith.constant 0 : index
    %124 = vector.load %arg1[%c0_43, %c3_44, %123, %c0_45, %c0_46] : memref<1x4x16x4x4xf32, #tpu.memory_space<vmem>>, vector<1x1x4x4x4xf32>
    %125 = vector.shape_cast %124 : vector<1x1x4x4x4xf32> to vector<4x4x4xf32>
    %126 = vector.extract_strided_slice %125 {offsets = [0, 0, 0], sizes = [1, 4, 4], strides = [1, 1, 1]} : vector<4x4x4xf32> to vector<1x4x4xf32>
    %127 = vector.shape_cast %126 : vector<1x4x4xf32> to vector<4x4xf32>
    %128 = vector.extract_strided_slice %125 {offsets = [1, 0, 0], sizes = [1, 4, 4], strides = [1, 1, 1]} : vector<4x4x4xf32> to vector<1x4x4xf32>
    %129 = vector.shape_cast %128 : vector<1x4x4xf32> to vector<4x4xf32>
    %130 = vector.extract_strided_slice %125 {offsets = [2, 0, 0], sizes = [1, 4, 4], strides = [1, 1, 1]} : vector<4x4x4xf32> to vector<1x4x4xf32>
    %131 = vector.shape_cast %130 : vector<1x4x4xf32> to vector<4x4xf32>
    %132 = vector.extract_strided_slice %125 {offsets = [3, 0, 0], sizes = [1, 4, 4], strides = [1, 1, 1]} : vector<4x4x4xf32> to vector<1x4x4xf32>
    %133 = vector.shape_cast %132 : vector<1x4x4xf32> to vector<4x4xf32>
    %134 = tpu.concatenate %127, %129, %131, %133 in 1 : vector<4x4xf32>, vector<4x4xf32>, vector<4x4xf32>, vector<4x4xf32> -> vector<4x16xf32>
    %135 = vector.shape_cast %134 : vector<4x16xf32> to vector<1x4x16xf32>
    %c0_47 = arith.constant 0 : index
    %136 = arith.index_cast %c1_i32 : i32 to index
    %c0_48 = arith.constant 0 : index
    %c48_49 = arith.constant 48 : index
    %137 = vector.load %arg2[%c0_47, %136, %c0_48, %c48_49] : memref<1x4x4x64xf32, #tpu.memory_space<vmem>>, vector<1x1x4x16xf32>
    %138 = vector.shape_cast %137 : vector<1x1x4x16xf32> to vector<1x4x16xf32>
    %139 = vector.shape_cast %135 : vector<1x4x16xf32> to vector<1x1x4x16xf32>
    tpu.vector_store %arg2[%c0_47, %136, %c0_48, %c48_49], %139 {strides = array<i32>} : memref<1x4x4x64xf32, #tpu.memory_space<vmem>>, vector<1x1x4x16xf32>,
    %c2_i32 = arith.constant 2 : i32
    %c4_i32_50 = arith.constant 4 : i32
    %140 = arith.muli %c2_i32, %c4_i32_50 : i32
    %141 = tpu.assume_multiple %140, 4 : i32
    %c0_51 = arith.constant 0 : index
    %c0_52 = arith.constant 0 : index
    %142 = arith.index_cast %141 : i32 to index
    %c0_53 = arith.constant 0 : index
    %c0_54 = arith.constant 0 : index
    %143 = vector.load %arg1[%c0_51, %c0_52, %142, %c0_53, %c0_54] : memref<1x4x16x4x4xf32, #tpu.memory_space<vmem>>, vector<1x1x4x4x4xf32>
    %144 = vector.shape_cast %143 : vector<1x1x4x4x4xf32> to vector<4x4x4xf32>
    %145 = vector.extract_strided_slice %144 {offsets = [0, 0, 0], sizes = [1, 4, 4], strides = [1, 1, 1]} : vector<4x4x4xf32> to vector<1x4x4xf32>
    %146 = vector.shape_cast %145 : vector<1x4x4xf32> to vector<4x4xf32>
    %147 = vector.extract_strided_slice %144 {offsets = [1, 0, 0], sizes = [1, 4, 4], strides = [1, 1, 1]} : vector<4x4x4xf32> to vector<1x4x4xf32>
    %148 = vector.shape_cast %147 : vector<1x4x4xf32> to vector<4x4xf32>
    %149 = vector.extract_strided_slice %144 {offsets = [2, 0, 0], sizes = [1, 4, 4], strides = [1, 1, 1]} : vector<4x4x4xf32> to vector<1x4x4xf32>
    %150 = vector.shape_cast %149 : vector<1x4x4xf32> to vector<4x4xf32>
    %151 = vector.extract_strided_slice %144 {offsets = [3, 0, 0], sizes = [1, 4, 4], strides = [1, 1, 1]} : vector<4x4x4xf32> to vector<1x4x4xf32>
    %152 = vector.shape_cast %151 : vector<1x4x4xf32> to vector<4x4xf32>
    %153 = tpu.concatenate %146, %148, %150, %152 in 1 : vector<4x4xf32>, vector<4x4xf32>, vector<4x4xf32>, vector<4x4xf32> -> vector<4x16xf32>
    %154 = vector.shape_cast %153 : vector<4x16xf32> to vector<1x4x16xf32>
    %c0_55 = arith.constant 0 : index
    %155 = arith.index_cast %c2_i32 : i32 to index
    %c0_56 = arith.constant 0 : index
    %c0_57 = arith.constant 0 : index
    %156 = vector.load %arg2[%c0_55, %155, %c0_56, %c0_57] : memref<1x4x4x64xf32, #tpu.memory_space<vmem>>, vector<1x1x4x16xf32>
    %157 = vector.shape_cast %156 : vector<1x1x4x16xf32> to vector<1x4x16xf32>
    %158 = vector.shape_cast %154 : vector<1x4x16xf32> to vector<1x1x4x16xf32>
    tpu.vector_store %arg2[%c0_55, %155, %c0_56, %c0_57], %158 {strides = array<i32>} : memref<1x4x4x64xf32, #tpu.memory_space<vmem>>, vector<1x1x4x16xf32>,
    %c0_58 = arith.constant 0 : index
    %c1_59 = arith.constant 1 : index
    %159 = arith.index_cast %141 : i32 to index
    %c0_60 = arith.constant 0 : index
    %c0_61 = arith.constant 0 : index
    %160 = vector.load %arg1[%c0_58, %c1_59, %159, %c0_60, %c0_61] : memref<1x4x16x4x4xf32, #tpu.memory_space<vmem>>, vector<1x1x4x4x4xf32>
    %161 = vector.shape_cast %160 : vector<1x1x4x4x4xf32> to vector<4x4x4xf32>
    %162 = vector.extract_strided_slice %161 {offsets = [0, 0, 0], sizes = [1, 4, 4], strides = [1, 1, 1]} : vector<4x4x4xf32> to vector<1x4x4xf32>
    %163 = vector.shape_cast %162 : vector<1x4x4xf32> to vector<4x4xf32>
    %164 = vector.extract_strided_slice %161 {offsets = [1, 0, 0], sizes = [1, 4, 4], strides = [1, 1, 1]} : vector<4x4x4xf32> to vector<1x4x4xf32>
    %165 = vector.shape_cast %164 : vector<1x4x4xf32> to vector<4x4xf32>
    %166 = vector.extract_strided_slice %161 {offsets = [2, 0, 0], sizes = [1, 4, 4], strides = [1, 1, 1]} : vector<4x4x4xf32> to vector<1x4x4xf32>
    %167 = vector.shape_cast %166 : vector<1x4x4xf32> to vector<4x4xf32>
    %168 = vector.extract_strided_slice %161 {offsets = [3, 0, 0], sizes = [1, 4, 4], strides = [1, 1, 1]} : vector<4x4x4xf32> to vector<1x4x4xf32>
    %169 = vector.shape_cast %168 : vector<1x4x4xf32> to vector<4x4xf32>
    %170 = tpu.concatenate %163, %165, %167, %169 in 1 : vector<4x4xf32>, vector<4x4xf32>, vector<4x4xf32>, vector<4x4xf32> -> vector<4x16xf32>
    %171 = vector.shape_cast %170 : vector<4x16xf32> to vector<1x4x16xf32>
    %c0_62 = arith.constant 0 : index
    %172 = arith.index_cast %c2_i32 : i32 to index
    %c0_63 = arith.constant 0 : index
    %c16_64 = arith.constant 16 : index
    %173 = vector.load %arg2[%c0_62, %172, %c0_63, %c16_64] : memref<1x4x4x64xf32, #tpu.memory_space<vmem>>, vector<1x1x4x16xf32>
    %174 = vector.shape_cast %173 : vector<1x1x4x16xf32> to vector<1x4x16xf32>
    %175 = vector.shape_cast %171 : vector<1x4x16xf32> to vector<1x1x4x16xf32>
    tpu.vector_store %arg2[%c0_62, %172, %c0_63, %c16_64], %175 {strides = array<i32>} : memref<1x4x4x64xf32, #tpu.memory_space<vmem>>, vector<1x1x4x16xf32>,
    %c0_65 = arith.constant 0 : index
    %c2_66 = arith.constant 2 : index
    %176 = arith.index_cast %141 : i32 to index
    %c0_67 = arith.constant 0 : index
    %c0_68 = arith.constant 0 : index
    %177 = vector.load %arg1[%c0_65, %c2_66, %176, %c0_67, %c0_68] : memref<1x4x16x4x4xf32, #tpu.memory_space<vmem>>, vector<1x1x4x4x4xf32>
    %178 = vector.shape_cast %177 : vector<1x1x4x4x4xf32> to vector<4x4x4xf32>
    %179 = vector.extract_strided_slice %178 {offsets = [0, 0, 0], sizes = [1, 4, 4], strides = [1, 1, 1]} : vector<4x4x4xf32> to vector<1x4x4xf32>
    %180 = vector.shape_cast %179 : vector<1x4x4xf32> to vector<4x4xf32>
    %181 = vector.extract_strided_slice %178 {offsets = [1, 0, 0], sizes = [1, 4, 4], strides = [1, 1, 1]} : vector<4x4x4xf32> to vector<1x4x4xf32>
    %182 = vector.shape_cast %181 : vector<1x4x4xf32> to vector<4x4xf32>
    %183 = vector.extract_strided_slice %178 {offsets = [2, 0, 0], sizes = [1, 4, 4], strides = [1, 1, 1]} : vector<4x4x4xf32> to vector<1x4x4xf32>
    %184 = vector.shape_cast %183 : vector<1x4x4xf32> to vector<4x4xf32>
    %185 = vector.extract_strided_slice %178 {offsets = [3, 0, 0], sizes = [1, 4, 4], strides = [1, 1, 1]} : vector<4x4x4xf32> to vector<1x4x4xf32>
    %186 = vector.shape_cast %185 : vector<1x4x4xf32> to vector<4x4xf32>
    %187 = tpu.concatenate %180, %182, %184, %186 in 1 : vector<4x4xf32>, vector<4x4xf32>, vector<4x4xf32>, vector<4x4xf32> -> vector<4x16xf32>
    %188 = vector.shape_cast %187 : vector<4x16xf32> to vector<1x4x16xf32>
    %c0_69 = arith.constant 0 : index
    %189 = arith.index_cast %c2_i32 : i32 to index
    %c0_70 = arith.constant 0 : index
    %c32_71 = arith.constant 32 : index
    %190 = vector.load %arg2[%c0_69, %189, %c0_70, %c32_71] : memref<1x4x4x64xf32, #tpu.memory_space<vmem>>, vector<1x1x4x16xf32>
    %191 = vector.shape_cast %190 : vector<1x1x4x16xf32> to vector<1x4x16xf32>
    %192 = vector.shape_cast %188 : vector<1x4x16xf32> to vector<1x1x4x16xf32>
    tpu.vector_store %arg2[%c0_69, %189, %c0_70, %c32_71], %192 {strides = array<i32>} : memref<1x4x4x64xf32, #tpu.memory_space<vmem>>, vector<1x1x4x16xf32>,
    %c0_72 = arith.constant 0 : index
    %c3_73 = arith.constant 3 : index
    %193 = arith.index_cast %141 : i32 to index
    %c0_74 = arith.constant 0 : index
    %c0_75 = arith.constant 0 : index
    %194 = vector.load %arg1[%c0_72, %c3_73, %193, %c0_74, %c0_75] : memref<1x4x16x4x4xf32, #tpu.memory_space<vmem>>, vector<1x1x4x4x4xf32>
    %195 = vector.shape_cast %194 : vector<1x1x4x4x4xf32> to vector<4x4x4xf32>
    %196 = vector.extract_strided_slice %195 {offsets = [0, 0, 0], sizes = [1, 4, 4], strides = [1, 1, 1]} : vector<4x4x4xf32> to vector<1x4x4xf32>
    %197 = vector.shape_cast %196 : vector<1x4x4xf32> to vector<4x4xf32>
    %198 = vector.extract_strided_slice %195 {offsets = [1, 0, 0], sizes = [1, 4, 4], strides = [1, 1, 1]} : vector<4x4x4xf32> to vector<1x4x4xf32>
    %199 = vector.shape_cast %198 : vector<1x4x4xf32> to vector<4x4xf32>
    %200 = vector.extract_strided_slice %195 {offsets = [2, 0, 0], sizes = [1, 4, 4], strides = [1, 1, 1]} : vector<4x4x4xf32> to vector<1x4x4xf32>
    %201 = vector.shape_cast %200 : vector<1x4x4xf32> to vector<4x4xf32>
    %202 = vector.extract_strided_slice %195 {offsets = [3, 0, 0], sizes = [1, 4, 4], strides = [1, 1, 1]} : vector<4x4x4xf32> to vector<1x4x4xf32>
    %203 = vector.shape_cast %202 : vector<1x4x4xf32> to vector<4x4xf32>
    %204 = tpu.concatenate %197, %199, %201, %203 in 1 : vector<4x4xf32>, vector<4x4xf32>, vector<4x4xf32>, vector<4x4xf32> -> vector<4x16xf32>
    %205 = vector.shape_cast %204 : vector<4x16xf32> to vector<1x4x16xf32>
    %c0_76 = arith.constant 0 : index
    %206 = arith.index_cast %c2_i32 : i32 to index
    %c0_77 = arith.constant 0 : index
    %c48_78 = arith.constant 48 : index
    %207 = vector.load %arg2[%c0_76, %206, %c0_77, %c48_78] : memref<1x4x4x64xf32, #tpu.memory_space<vmem>>, vector<1x1x4x16xf32>
    %208 = vector.shape_cast %207 : vector<1x1x4x16xf32> to vector<1x4x16xf32>
    %209 = vector.shape_cast %205 : vector<1x4x16xf32> to vector<1x1x4x16xf32>
    tpu.vector_store %arg2[%c0_76, %206, %c0_77, %c48_78], %209 {strides = array<i32>} : memref<1x4x4x64xf32, #tpu.memory_space<vmem>>, vector<1x1x4x16xf32>,
    %c3_i32 = arith.constant 3 : i32
    %c4_i32_79 = arith.constant 4 : i32
    %210 = arith.muli %c3_i32, %c4_i32_79 : i32
    %211 = tpu.assume_multiple %210, 4 : i32
    %c0_80 = arith.constant 0 : index
    %c0_81 = arith.constant 0 : index
    %212 = arith.index_cast %211 : i32 to index
    %c0_82 = arith.constant 0 : index
    %c0_83 = arith.constant 0 : index
    %213 = vector.load %arg1[%c0_80, %c0_81, %212, %c0_82, %c0_83] : memref<1x4x16x4x4xf32, #tpu.memory_space<vmem>>, vector<1x1x4x4x4xf32>
    %214 = vector.shape_cast %213 : vector<1x1x4x4x4xf32> to vector<4x4x4xf32>
    %215 = vector.extract_strided_slice %214 {offsets = [0, 0, 0], sizes = [1, 4, 4], strides = [1, 1, 1]} : vector<4x4x4xf32> to vector<1x4x4xf32>
    %216 = vector.shape_cast %215 : vector<1x4x4xf32> to vector<4x4xf32>
    %217 = vector.extract_strided_slice %214 {offsets = [1, 0, 0], sizes = [1, 4, 4], strides = [1, 1, 1]} : vector<4x4x4xf32> to vector<1x4x4xf32>
    %218 = vector.shape_cast %217 : vector<1x4x4xf32> to vector<4x4xf32>
    %219 = vector.extract_strided_slice %214 {offsets = [2, 0, 0], sizes = [1, 4, 4], strides = [1, 1, 1]} : vector<4x4x4xf32> to vector<1x4x4xf32>
    %220 = vector.shape_cast %219 : vector<1x4x4xf32> to vector<4x4xf32>
    %221 = vector.extract_strided_slice %214 {offsets = [3, 0, 0], sizes = [1, 4, 4], strides = [1, 1, 1]} : vector<4x4x4xf32> to vector<1x4x4xf32>
    %222 = vector.shape_cast %221 : vector<1x4x4xf32> to vector<4x4xf32>
    %223 = tpu.concatenate %216, %218, %220, %222 in 1 : vector<4x4xf32>, vector<4x4xf32>, vector<4x4xf32>, vector<4x4xf32> -> vector<4x16xf32>
    %224 = vector.shape_cast %223 : vector<4x16xf32> to vector<1x4x16xf32>
    %c0_84 = arith.constant 0 : index
    %225 = arith.index_cast %c3_i32 : i32 to index
    %c0_85 = arith.constant 0 : index
    %c0_86 = arith.constant 0 : index
    %226 = vector.load %arg2[%c0_84, %225, %c0_85, %c0_86] : memref<1x4x4x64xf32, #tpu.memory_space<vmem>>, vector<1x1x4x16xf32>
    %227 = vector.shape_cast %226 : vector<1x1x4x16xf32> to vector<1x4x16xf32>
    %228 = vector.shape_cast %224 : vector<1x4x16xf32> to vector<1x1x4x16xf32>
    tpu.vector_store %arg2[%c0_84, %225, %c0_85, %c0_86], %228 {strides = array<i32>} : memref<1x4x4x64xf32, #tpu.memory_space<vmem>>, vector<1x1x4x16xf32>,
    %c0_87 = arith.constant 0 : index
    %c1_88 = arith.constant 1 : index
    %229 = arith.index_cast %211 : i32 to index
    %c0_89 = arith.constant 0 : index
    %c0_90 = arith.constant 0 : index
    %230 = vector.load %arg1[%c0_87, %c1_88, %229, %c0_89, %c0_90] : memref<1x4x16x4x4xf32, #tpu.memory_space<vmem>>, vector<1x1x4x4x4xf32>
    %231 = vector.shape_cast %230 : vector<1x1x4x4x4xf32> to vector<4x4x4xf32>
    %232 = vector.extract_strided_slice %231 {offsets = [0, 0, 0], sizes = [1, 4, 4], strides = [1, 1, 1]} : vector<4x4x4xf32> to vector<1x4x4xf32>
    %233 = vector.shape_cast %232 : vector<1x4x4xf32> to vector<4x4xf32>
    %234 = vector.extract_strided_slice %231 {offsets = [1, 0, 0], sizes = [1, 4, 4], strides = [1, 1, 1]} : vector<4x4x4xf32> to vector<1x4x4xf32>
    %235 = vector.shape_cast %234 : vector<1x4x4xf32> to vector<4x4xf32>
    %236 = vector.extract_strided_slice %231 {offsets = [2, 0, 0], sizes = [1, 4, 4], strides = [1, 1, 1]} : vector<4x4x4xf32> to vector<1x4x4xf32>
    %237 = vector.shape_cast %236 : vector<1x4x4xf32> to vector<4x4xf32>
    %238 = vector.extract_strided_slice %231 {offsets = [3, 0, 0], sizes = [1, 4, 4], strides = [1, 1, 1]} : vector<4x4x4xf32> to vector<1x4x4xf32>
    %239 = vector.shape_cast %238 : vector<1x4x4xf32> to vector<4x4xf32>
    %240 = tpu.concatenate %233, %235, %237, %239 in 1 : vector<4x4xf32>, vector<4x4xf32>, vector<4x4xf32>, vector<4x4xf32> -> vector<4x16xf32>
    %241 = vector.shape_cast %240 : vector<4x16xf32> to vector<1x4x16xf32>
    %c0_91 = arith.constant 0 : index
    %242 = arith.index_cast %c3_i32 : i32 to index
    %c0_92 = arith.constant 0 : index
    %c16_93 = arith.constant 16 : index
    %243 = vector.load %arg2[%c0_91, %242, %c0_92, %c16_93] : memref<1x4x4x64xf32, #tpu.memory_space<vmem>>, vector<1x1x4x16xf32>
    %244 = vector.shape_cast %243 : vector<1x1x4x16xf32> to vector<1x4x16xf32>
    %245 = vector.shape_cast %241 : vector<1x4x16xf32> to vector<1x1x4x16xf32>
    tpu.vector_store %arg2[%c0_91, %242, %c0_92, %c16_93], %245 {strides = array<i32>} : memref<1x4x4x64xf32, #tpu.memory_space<vmem>>, vector<1x1x4x16xf32>,
    %c0_94 = arith.constant 0 : index
    %c2_95 = arith.constant 2 : index
    %246 = arith.index_cast %211 : i32 to index
    %c0_96 = arith.constant 0 : index
    %c0_97 = arith.constant 0 : index
    %247 = vector.load %arg1[%c0_94, %c2_95, %246, %c0_96, %c0_97] : memref<1x4x16x4x4xf32, #tpu.memory_space<vmem>>, vector<1x1x4x4x4xf32>
    %248 = vector.shape_cast %247 : vector<1x1x4x4x4xf32> to vector<4x4x4xf32>
    %249 = vector.extract_strided_slice %248 {offsets = [0, 0, 0], sizes = [1, 4, 4], strides = [1, 1, 1]} : vector<4x4x4xf32> to vector<1x4x4xf32>
    %250 = vector.shape_cast %249 : vector<1x4x4xf32> to vector<4x4xf32>
    %251 = vector.extract_strided_slice %248 {offsets = [1, 0, 0], sizes = [1, 4, 4], strides = [1, 1, 1]} : vector<4x4x4xf32> to vector<1x4x4xf32>
    %252 = vector.shape_cast %251 : vector<1x4x4xf32> to vector<4x4xf32>
    %253 = vector.extract_strided_slice %248 {offsets = [2, 0, 0], sizes = [1, 4, 4], strides = [1, 1, 1]} : vector<4x4x4xf32> to vector<1x4x4xf32>
    %254 = vector.shape_cast %253 : vector<1x4x4xf32> to vector<4x4xf32>
    %255 = vector.extract_strided_slice %248 {offsets = [3, 0, 0], sizes = [1, 4, 4], strides = [1, 1, 1]} : vector<4x4x4xf32> to vector<1x4x4xf32>
    %256 = vector.shape_cast %255 : vector<1x4x4xf32> to vector<4x4xf32>
    %257 = tpu.concatenate %250, %252, %254, %256 in 1 : vector<4x4xf32>, vector<4x4xf32>, vector<4x4xf32>, vector<4x4xf32> -> vector<4x16xf32>
    %258 = vector.shape_cast %257 : vector<4x16xf32> to vector<1x4x16xf32>
    %c0_98 = arith.constant 0 : index
    %259 = arith.index_cast %c3_i32 : i32 to index
    %c0_99 = arith.constant 0 : index
    %c32_100 = arith.constant 32 : index
    %260 = vector.load %arg2[%c0_98, %259, %c0_99, %c32_100] : memref<1x4x4x64xf32, #tpu.memory_space<vmem>>, vector<1x1x4x16xf32>
    %261 = vector.shape_cast %260 : vector<1x1x4x16xf32> to vector<1x4x16xf32>
    %262 = vector.shape_cast %258 : vector<1x4x16xf32> to vector<1x1x4x16xf32>
    tpu.vector_store %arg2[%c0_98, %259, %c0_99, %c32_100], %262 {strides = array<i32>} : memref<1x4x4x64xf32, #tpu.memory_space<vmem>>, vector<1x1x4x16xf32>,
    %c0_101 = arith.constant 0 : index
    %c3_102 = arith.constant 3 : index
    %263 = arith.index_cast %211 : i32 to index
    %c0_103 = arith.constant 0 : index
    %c0_104 = arith.constant 0 : index
    %264 = vector.load %arg1[%c0_101, %c3_102, %263, %c0_103, %c0_104] : memref<1x4x16x4x4xf32, #tpu.memory_space<vmem>>, vector<1x1x4x4x4xf32>
    %265 = vector.shape_cast %264 : vector<1x1x4x4x4xf32> to vector<4x4x4xf32>
    %266 = vector.extract_strided_slice %265 {offsets = [0, 0, 0], sizes = [1, 4, 4], strides = [1, 1, 1]} : vector<4x4x4xf32> to vector<1x4x4xf32>
    %267 = vector.shape_cast %266 : vector<1x4x4xf32> to vector<4x4xf32>
    %268 = vector.extract_strided_slice %265 {offsets = [1, 0, 0], sizes = [1, 4, 4], strides = [1, 1, 1]} : vector<4x4x4xf32> to vector<1x4x4xf32>
    %269 = vector.shape_cast %268 : vector<1x4x4xf32> to vector<4x4xf32>
    %270 = vector.extract_strided_slice %265 {offsets = [2, 0, 0], sizes = [1, 4, 4], strides = [1, 1, 1]} : vector<4x4x4xf32> to vector<1x4x4xf32>
    %271 = vector.shape_cast %270 : vector<1x4x4xf32> to vector<4x4xf32>
    %272 = vector.extract_strided_slice %265 {offsets = [3, 0, 0], sizes = [1, 4, 4], strides = [1, 1, 1]} : vector<4x4x4xf32> to vector<1x4x4xf32>
    %273 = vector.shape_cast %272 : vector<1x4x4xf32> to vector<4x4xf32>
    %274 = tpu.concatenate %267, %269, %271, %273 in 1 : vector<4x4xf32>, vector<4x4xf32>, vector<4x4xf32>, vector<4x4xf32> -> vector<4x16xf32>
    %275 = vector.shape_cast %274 : vector<4x16xf32> to vector<1x4x16xf32>
    %c0_105 = arith.constant 0 : index
    %276 = arith.index_cast %c3_i32 : i32 to index
    %c0_106 = arith.constant 0 : index
    %c48_107 = arith.constant 48 : index
    %277 = vector.load %arg2[%c0_105, %276, %c0_106, %c48_107] : memref<1x4x4x64xf32, #tpu.memory_space<vmem>>, vector<1x1x4x16xf32>
    %278 = vector.shape_cast %277 : vector<1x1x4x16xf32> to vector<1x4x16xf32>
    %279 = vector.shape_cast %275 : vector<1x4x16xf32> to vector<1x1x4x16xf32>
    tpu.vector_store %arg2[%c0_105, %276, %c0_106, %c48_107], %279 {strides = array<i32>} : memref<1x4x4x64xf32, #tpu.memory_space<vmem>>, vector<1x1x4x16xf32>,
    %c4_i32_108 = arith.constant 4 : i32
    return
  }
  func.func @transform_0(%arg0: i32) -> (i32, i32, i32, i32, i32) {
    %c0_i32 = arith.constant 0 : i32
    %c0_i32_0 = arith.constant 0 : i32
    %c0_i32_1 = arith.constant 0 : i32
    %c0_i32_2 = arith.constant 0 : i32
    %c0_i32_3 = arith.constant 0 : i32
    return %arg0, %c0_i32, %c0_i32_0, %c0_i32_1, %c0_i32_2 : i32, i32, i32, i32, i32
  }
  func.func @transform_1(%arg0: i32) -> (i32, i32, i32, i32) {
    %c0_i32 = arith.constant 0 : i32
    %c0_i32_0 = arith.constant 0 : i32
    %c0_i32_1 = arith.constant 0 : i32
    %c0_i32_2 = arith.constant 0 : i32
    return %arg0, %c0_i32, %c0_i32_0, %c0_i32_1 : i32, i32, i32, i32
  }
}

</mosaic_0001>

<llo_original>
// kernel: tpu_custom_call.1
$region0: #{tpu_custom_call.1}
  #allocation0 [shape = 'u32[]', space=smem, size = 0x4, offset = 0x4, fixed_abs, tag = 'smem constant byte address 0x4 - core index']
  #allocation1 [shape = 'u32[144,128]{1,0:T(1,128)}', space=vmem, size = 0x12000, scoped, tag = 'internal scratch']
  %s0 = inlined_call_operand.vmem [shape: f32[2,4,16,4,4], index: 0, kind: input, shape index: {}]
  %s1 = inlined_call_operand.hbm [shape: f32[2,4,4,64], index: 1, kind: output, shape index: {}]
  %s2 = sld [smem:[#allocation0]]
  $region37: #{tpu_custom_call.1} parent=0
    _
  %s4 = ssub.s32 1, %s2
  %s5 = scalar_select 0, %s4, %s2
  $region1: #{tpu_custom_call.1} parent=0
    #allocation2 [shape = 'u8[16384]{0}', space=vmem, size = 0x4000, scoped, tag = 'output window, operand 0']
    #allocation3 [shape = 's32[2]{0}', space=sflag, size = 0x8, scoped, tag = 'scoped memory for tpu_custom_call.1']
    %6 = vsyncpa [#allocation3], 0
    %s7 = scalar_lea.sflag [#allocation3], 1
    %8 = vsyncpa %s7, 0
    loop: start=0, step=1, limit=4
    $region2: #{tpu_custom_call.1} parent=1 // loop_pre_header
      _
    $region3: #{tpu_custom_call.1} parent=1 // loop_header
      %s10 = sphi 0, %s14
      %p11 = scmp.ge.s32.totalorder %s10, 4
      %s20 = sphi 0, %s22
      %s23 = sphi 0, %s20
      %s24 = sphi 0, %s23
      %s40 = sphi 0, %s24
      %s46 = sphi 0, %s48
      %s49 = sphi 0, %s46
      %s50 = sphi 0, %s49
      %s66 = sphi 0, %s50
    $region4: #{tpu_custom_call.1} parent=1 // loop_header_branch
      %13 = sbr.rel (%p11) target = $region8
    $region5: #{tpu_custom_call.1} parent=1 // loop_body
      %s15 = ssub.s32 %s10, 1
      %s16 = ssub.s32 %s10, 2
      %s17 = sadd.s32 %s10, 1
      %s18 = ssub.s32 %s10, %s17
      %p19 = scmp.eq.s32.totalorder %s18, 0
      %s21 = sadd.s32 %s20, 1
      %s22 = scalar_select %p19, %s20, %s21
      %p25 = pneg %p19
      %p26 = scmp.eq.s32.totalorder %s10, 1
      %p27 = por %p25, %p26
      %p28 = scmp.ne.s32.totalorder %s20, %s23
      %p29 = scmp.eq.s32.totalorder %s10, 0
      %p30 = por %p28, %p29
      %p31 = scmp.ne.s32.totalorder %s20, %s23
      %p32 = scmp.eq.s32.totalorder %s15, 1
      %p33 = por %p31, %p32
      %p34 = scmp.ne.s32.totalorder %s23, %s24
      %p35 = scmp.eq.s32.totalorder %s15, 0
      %p36 = por %p34, %p35
      %p37 = scmp.ne.s32.totalorder %s23, %s24
      %p38 = scmp.eq.s32.totalorder %s16, 1
      %p39 = por %p37, %p38
      %p41 = scmp.ne.s32.totalorder %s24, %s40
      %p42 = scmp.eq.s32.totalorder %s16, 0
      %p43 = por %p41, %p42
      %s44 = ssub.s32 %s10, %s17
      %p45 = scmp.eq.s32.totalorder %s44, 0
      %s47 = sadd.s32 %s46, 1
      %s48 = scalar_select %p45, %s46, %s47
      %p51 = pneg %p45
      %p52 = scmp.eq.s32.totalorder %s10, 1
      %p53 = por %p51, %p52
      %p54 = scmp.ne.s32.totalorder %s46, %s49
      %p55 = scmp.eq.s32.totalorder %s10, 0
      %p56 = por %p54, %p55
      %p57 = scmp.ne.s32.totalorder %s46, %s49
      %p58 = scmp.eq.s32.totalorder %s15, 1
      %p59 = por %p57, %p58
      %p60 = scmp.ne.s32.totalorder %s49, %s50
      %p61 = scmp.eq.s32.totalorder %s15, 0
      %p62 = por %p60, %p61
      %p63 = scmp.ne.s32.totalorder %s49, %s50
      %p64 = scmp.eq.s32.totalorder %s16, 1
      %p65 = por %p63, %p64
      %p67 = scmp.ne.s32.totalorder %s50, %s66
      %p68 = scmp.eq.s32.totalorder %s16, 0
      %p69 = por %p67, %p68
      %p70 = scmp.le.s32.totalorder 1, %s10
      %p71 = scmp.lt.s32.totalorder %s10, 3
      %p72 = pnand %p70, %p71
      %p73 = pneg %p72
      // Predicated region
      $region9: #{tpu_custom_call.1} parent=5 // pred_check
        _
      $region10: #{tpu_custom_call.1} parent=5 // pred_check_branch
        %75 = sbr.rel (%p72) target = $region12
      $region11: #{tpu_custom_call.1} parent=5 // pred_region
        %s76 = ssub.s32 %s10, 1
      $region12: #{tpu_custom_call.1} parent=5 // pred_fallthru
        _
      %p77 = scmp.lt.s32.totalorder %s10, 2
      // Predicated region
      $region13: #{tpu_custom_call.1} parent=5 // pred_check
        %p78 = pneg %p77
      $region14: #{tpu_custom_call.1} parent=5 // pred_check_branch
        %80 = sbr.rel (%p78) target = $region16
      $region15: #{tpu_custom_call.1} parent=5 // pred_region
        // Predicated region
        $region17: #{tpu_custom_call.1} parent=15 // pred_check
          %p81 = pneg %p30
        $region18: #{tpu_custom_call.1} parent=15 // pred_check_branch
          %83 = sbr.rel (%p81) target = $region20
        $region19: #{tpu_custom_call.1} parent=15 // pred_region
          %p84 = scmp.lt.s32.totalorder %s10, 1
          %s85 = scalar_select %p84, %s10, 1
          %s86 = smul.addr %s85, 64
          %s87 = smul.addr %s86, 4
          %s88 = scalar_lea.vmem %s0, %s87
        $region20: #{tpu_custom_call.1} parent=15 // pred_fallthru
          _
      $region16: #{tpu_custom_call.1} parent=5 // pred_fallthru
        _
      %p89 = scmp.le.s32.totalorder 1, %s10
      %p90 = scmp.lt.s32.totalorder %s10, 3
      %p91 = pnand %p89, %p90
      %p92 = pneg %p91
      // Predicated region
      $region21: #{tpu_custom_call.1} parent=5 // pred_check
        _
      $region22: #{tpu_custom_call.1} parent=5 // pred_check_branch
        %94 = sbr.rel (%p91) target = $region24
      $region23: #{tpu_custom_call.1} parent=5 // pred_region
        %s95 = ssub.s32 %s10, 1
        %p96 = scmp.lt.s32.totalorder %s15, 1
        %s97 = scalar_select %p96, %s15, 1
        %s98 = smul.addr %s97, 64
        %s99 = smul.addr %s98, 4
        %s100 = scalar_lea.vmem %s0, %s99
        %p101 = pneg %p36
        %p102 = pneg %p33
        %p103 = pneg %p62
        %p104 = pneg %p59
        %s105 = sand.u32 %s49, 1
        %s106 = scalar_lea.sflag [#allocation3], %s105
        %s107 = sand.u32 %s49, 1
        %s108 = smul.addr %s107, 16
        %s109 = scalar_lea.vmem [#allocation2], %s108
        %p110 = scmp.lt.s32.totalorder %s15, 1
        %s111 = scalar_select %p110, %s15, 1
        %s112 = smul.addr %s111, 64
        %s113 = smul.addr %s112, 4
        %s114 = scalar_lea.vmem %s0, %s113
        %s115 = smul.u32 0, 4
        %s116 = scalar_lea.vmem %s114, %s115
        %v117 = vld [vmem:[%s116] sm:$0xf]
        %v118 = vld [vmem:[%s116 + $0x4] sm:$0xf]
        %v119 = vld [vmem:[%s116 + $0x8] sm:$0xf]
        %v120 = vld [vmem:[%s116 + $0xc] sm:$0xf]
        %122 = vrot.lane.b32.xlu0 %v118, 4
        %v123 = vpop.permute.xlu0 %122
        %126 = vrot.lane.b32.xlu0 %v119, 8
        %v127 = vpop.permute.xlu0 %126
        %130 = vrot.lane.b32.xlu0 %v120, 12
        %v131 = vpop.permute.xlu0 %130
        %vm133 = vcmask 31744
        %v134 = vsel %vm133, %v117, %v123
        %vm135 = vcmask 64512
        %v136 = vsel %vm135, %v134, %v127
        %vm137 = vcmask 97280
        %v138 = vsel %vm137, %v136, %v131
        %vm139 = vcmask 125952
        %140 = vst.msk [vmem:[%s109] sm:$0xf] %vm139, %v138
        %s141 = sadd.s32 %s115, 64
        %s142 = scalar_lea.vmem %s114, %s141
        %v143 = vld [vmem:[%s142] sm:$0xf]
        %v144 = vld [vmem:[%s142 + $0x4] sm:$0xf]
        %v145 = vld [vmem:[%s142 + $0x8] sm:$0xf]
        %v146 = vld [vmem:[%s142 + $0xc] sm:$0xf]
        %148 = vrot.lane.b32.xlu0 %v144, 4
        %v149 = vpop.permute.xlu0 %148
        %152 = vrot.lane.b32.xlu0 %v145, 8
        %v153 = vpop.permute.xlu0 %152
        %156 = vrot.lane.b32.xlu0 %v146, 12
        %v157 = vpop.permute.xlu0 %156
        %v159 = vsel %vm133, %v143, %v149
        %v160 = vsel %vm135, %v159, %v153
        %v161 = vsel %vm137, %v160, %v157
        %163 = vrot.lane.b32.xlu0 %v161, 16
        %v164 = vpop.permute.xlu0 %163
        %vm166 = vcmask 257152
        %167 = vst.msk [vmem:[%s109] sm:$0xf] %vm166, %v164
        %s168 = sadd.s32 %s115, 128
        %s169 = scalar_lea.vmem %s114, %s168
        %v170 = vld [vmem:[%s169] sm:$0xf]
        %v171 = vld [vmem:[%s169 + $0x4] sm:$0xf]
        %v172 = vld [vmem:[%s169 + $0x8] sm:$0xf]
        %v173 = vld [vmem:[%s169 + $0xc] sm:$0xf]
        %175 = vrot.lane.b32.xlu0 %v171, 4
        %v176 = vpop.permute.xlu0 %175
        %179 = vrot.lane.b32.xlu0 %v172, 8
        %v180 = vpop.permute.xlu0 %179
        %183 = vrot.lane.b32.xlu0 %v173, 12
        %v184 = vpop.permute.xlu0 %183
        %v186 = vsel %vm133, %v170, %v176
        %v187 = vsel %vm135, %v186, %v180
        %v188 = vsel %vm137, %v187, %v184
        %190 = vrot.lane.b32.xlu0 %v188, 32
        %v191 = vpop.permute.xlu0 %190
        %vm193 = vcmask 388352
        %194 = vst.msk [vmem:[%s109] sm:$0xf] %vm193, %v191
        %s195 = sadd.s32 %s115, 192
        %s196 = scalar_lea.vmem %s114, %s195
        %v197 = vld [vmem:[%s196] sm:$0xf]
        %v198 = vld [vmem:[%s196 + $0x4] sm:$0xf]
        %v199 = vld [vmem:[%s196 + $0x8] sm:$0xf]
        %v200 = vld [vmem:[%s196 + $0xc] sm:$0xf]
        %202 = vrot.lane.b32.xlu0 %v198, 4
        %v203 = vpop.permute.xlu0 %202
        %206 = vrot.lane.b32.xlu0 %v199, 8
        %v207 = vpop.permute.xlu0 %206
        %210 = vrot.lane.b32.xlu0 %v200, 12
        %v211 = vpop.permute.xlu0 %210
        %v213 = vsel %vm133, %v197, %v203
        %v214 = vsel %vm135, %v213, %v207
        %v215 = vsel %vm137, %v214, %v211
        %217 = vrot.lane.b32.xlu0 %v215, 48
        %v218 = vpop.permute.xlu0 %217
        %vm220 = vcmask 519552
        %221 = vst.msk [vmem:[%s109] sm:$0xf] %vm220, %v218
        %s222 = smul.u32 4, 4
        %s223 = scalar_lea.vmem %s114, %s222
        %v224 = vld [vmem:[%s223] sm:$0xf]
        %v225 = vld [vmem:[%s223 + $0x4] sm:$0xf]
        %v226 = vld [vmem:[%s223 + $0x8] sm:$0xf]
        %v227 = vld [vmem:[%s223 + $0xc] sm:$0xf]
        %229 = vrot.lane.b32.xlu0 %v225, 4
        %v230 = vpop.permute.xlu0 %229
        %233 = vrot.lane.b32.xlu0 %v226, 8
        %v234 = vpop.permute.xlu0 %233
        %237 = vrot.lane.b32.xlu0 %v227, 12
        %v238 = vpop.permute.xlu0 %237
        %v240 = vsel %vm133, %v224, %v230
        %v241 = vsel %vm135, %v240, %v234
        %v242 = vsel %vm137, %v241, %v238
        %s243 = scalar_lea.vmem %s109, 4 [#allocation2]
        %244 = vst.msk [vmem:[%s243] sm:$0xf] %vm139, %v242
        %s245 = sadd.s32 %s222, 64
        %s246 = scalar_lea.vmem %s114, %s245
        %v247 = vld [vmem:[%s246] sm:$0xf]
        %v248 = vld [vmem:[%s246 + $0x4] sm:$0xf]
        %v249 = vld [vmem:[%s246 + $0x8] sm:$0xf]
        %v250 = vld [vmem:[%s246 + $0xc] sm:$0xf]
        %252 = vrot.lane.b32.xlu0 %v248, 4
        %v253 = vpop.permute.xlu0 %252
        %256 = vrot.lane.b32.xlu0 %v249, 8
        %v257 = vpop.permute.xlu0 %256
        %260 = vrot.lane.b32.xlu0 %v250, 12
        %v261 = vpop.permute.xlu0 %260
        %v263 = vsel %vm133, %v247, %v253
        %v264 = vsel %vm135, %v263, %v257
        %v265 = vsel %vm137, %v264, %v261
        %267 = vrot.lane.b32.xlu0 %v265, 16
        %v268 = vpop.permute.xlu0 %267
        %270 = vst.msk [vmem:[%s243] sm:$0xf] %vm166, %v268
        %s271 = sadd.s32 %s222, 128
        %s272 = scalar_lea.vmem %s114, %s271
        %v273 = vld [vmem:[%s272] sm:$0xf]
        %v274 = vld [vmem:[%s272 + $0x4] sm:$0xf]
        %v275 = vld [vmem:[%s272 + $0x8] sm:$0xf]
        %v276 = vld [vmem:[%s272 + $0xc] sm:$0xf]
        %278 = vrot.lane.b32.xlu0 %v274, 4
        %v279 = vpop.permute.xlu0 %278
        %282 = vrot.lane.b32.xlu0 %v275, 8
        %v283 = vpop.permute.xlu0 %282
        %286 = vrot.lane.b32.xlu0 %v276, 12
        %v287 = vpop.permute.xlu0 %286
        %v289 = vsel %vm133, %v273, %v279
        %v290 = vsel %vm135, %v289, %v283
        %v291 = vsel %vm137, %v290, %v287
        %293 = vrot.lane.b32.xlu0 %v291, 32
        %v294 = vpop.permute.xlu0 %293
        %296 = vst.msk [vmem:[%s243] sm:$0xf] %vm193, %v294
        %s297 = sadd.s32 %s222, 192
        %s298 = scalar_lea.vmem %s114, %s297
        %v299 = vld [vmem:[%s298] sm:$0xf]
        %v300 = vld [vmem:[%s298 + $0x4] sm:$0xf]
        %v301 = vld [vmem:[%s298 + $0x8] sm:$0xf]
        %v302 = vld [vmem:[%s298 + $0xc] sm:$0xf]
        %304 = vrot.lane.b32.xlu0 %v300, 4
        %v305 = vpop.permute.xlu0 %304
        %308 = vrot.lane.b32.xlu0 %v301, 8
        %v309 = vpop.permute.xlu0 %308
        %312 = vrot.lane.b32.xlu0 %v302, 12
        %v313 = vpop.permute.xlu0 %312
        %v315 = vsel %vm133, %v299, %v305
        %v316 = vsel %vm135, %v315, %v309
        %v317 = vsel %vm137, %v316, %v313
        %319 = vrot.lane.b32.xlu0 %v317, 48
        %v320 = vpop.permute.xlu0 %319
        %322 = vst.msk [vmem:[%s243] sm:$0xf] %vm220, %v320
        %s323 = smul.u32 8, 4
        %s324 = scalar_lea.vmem %s114, %s323
        %v325 = vld [vmem:[%s324] sm:$0xf]
        %v326 = vld [vmem:[%s324 + $0x4] sm:$0xf]
        %v327 = vld [vmem:[%s324 + $0x8] sm:$0xf]
        %v328 = vld [vmem:[%s324 + $0xc] sm:$0xf]
        %330 = vrot.lane.b32.xlu0 %v326, 4
        %v331 = vpop.permute.xlu0 %330
        %334 = vrot.lane.b32.xlu0 %v327, 8
        %v335 = vpop.permute.xlu0 %334
        %338 = vrot.lane.b32.xlu0 %v328, 12
        %v339 = vpop.permute.xlu0 %338
        %v341 = vsel %vm133, %v325, %v331
        %v342 = vsel %vm135, %v341, %v335
        %v343 = vsel %vm137, %v342, %v339
        %s344 = scalar_lea.vmem %s109, 8 [#allocation2]
        %345 = vst.msk [vmem:[%s344] sm:$0xf] %vm139, %v343
        %s346 = sadd.s32 %s323, 64
        %s347 = scalar_lea.vmem %s114, %s346
        %v348 = vld [vmem:[%s347] sm:$0xf]
        %v349 = vld [vmem:[%s347 + $0x4] sm:$0xf]
        %v350 = vld [vmem:[%s347 + $0x8] sm:$0xf]
        %v351 = vld [vmem:[%s347 + $0xc] sm:$0xf]
        %353 = vrot.lane.b32.xlu0 %v349, 4
        %v354 = vpop.permute.xlu0 %353
        %357 = vrot.lane.b32.xlu0 %v350, 8
        %v358 = vpop.permute.xlu0 %357
        %361 = vrot.lane.b32.xlu0 %v351, 12
        %v362 = vpop.permute.xlu0 %361
        %v364 = vsel %vm133, %v348, %v354
        %v365 = vsel %vm135, %v364, %v358
        %v366 = vsel %vm137, %v365, %v362
        %368 = vrot.lane.b32.xlu0 %v366, 16
        %v369 = vpop.permute.xlu0 %368
        %371 = vst.msk [vmem:[%s344] sm:$0xf] %vm166, %v369
        %s372 = sadd.s32 %s323, 128
        %s373 = scalar_lea.vmem %s114, %s372
        %v374 = vld [vmem:[%s373] sm:$0xf]
        %v375 = vld [vmem:[%s373 + $0x4] sm:$0xf]
        %v376 = vld [vmem:[%s373 + $0x8] sm:$0xf]
        %v377 = vld [vmem:[%s373 + $0xc] sm:$0xf]
        %379 = vrot.lane.b32.xlu0 %v375, 4
        %v380 = vpop.permute.xlu0 %379
        %383 = vrot.lane.b32.xlu0 %v376, 8
        %v384 = vpop.permute.xlu0 %383
        %387 = vrot.lane.b32.xlu0 %v377, 12
        %v388 = vpop.permute.xlu0 %387
        %v390 = vsel %vm133, %v374, %v380
        %v391 = vsel %vm135, %v390, %v384
        %v392 = vsel %vm137, %v391, %v388
        %394 = vrot.lane.b32.xlu0 %v392, 32
        %v395 = vpop.permute.xlu0 %394
        %397 = vst.msk [vmem:[%s344] sm:$0xf] %vm193, %v395
        %s398 = sadd.s32 %s323, 192
        %s399 = scalar_lea.vmem %s114, %s398
        %v400 = vld [vmem:[%s399] sm:$0xf]
        %v401 = vld [vmem:[%s399 + $0x4] sm:$0xf]
        %v402 = vld [vmem:[%s399 + $0x8] sm:$0xf]
        %v403 = vld [vmem:[%s399 + $0xc] sm:$0xf]
        %405 = vrot.lane.b32.xlu0 %v401, 4
        %v406 = vpop.permute.xlu0 %405
        %409 = vrot.lane.b32.xlu0 %v402, 8
        %v410 = vpop.permute.xlu0 %409
        %413 = vrot.lane.b32.xlu0 %v403, 12
        %v414 = vpop.permute.xlu0 %413
        %v416 = vsel %vm133, %v400, %v406
        %v417 = vsel %vm135, %v416, %v410
        %v418 = vsel %vm137, %v417, %v414
        %420 = vrot.lane.b32.xlu0 %v418, 48
        %v421 = vpop.permute.xlu0 %420
        %423 = vst.msk [vmem:[%s344] sm:$0xf] %vm220, %v421
        %s424 = smul.u32 12, 4
        %s425 = scalar_lea.vmem %s114, %s424
        %v426 = vld [vmem:[%s425] sm:$0xf]
        %v427 = vld [vmem:[%s425 + $0x4] sm:$0xf]
        %v428 = vld [vmem:[%s425 + $0x8] sm:$0xf]
        %v429 = vld [vmem:[%s425 + $0xc] sm:$0xf]
        %431 = vrot.lane.b32.xlu0 %v427, 4
        %v432 = vpop.permute.xlu0 %431
        %435 = vrot.lane.b32.xlu0 %v428, 8
        %v436 = vpop.permute.xlu0 %435
        %439 = vrot.lane.b32.xlu0 %v429, 12
        %v440 = vpop.permute.xlu0 %439
        %v442 = vsel %vm133, %v426, %v432
        %v443 = vsel %vm135, %v442, %v436
        %v444 = vsel %vm137, %v443, %v440
        %s445 = scalar_lea.vmem %s109, 12 [#allocation2]
        %446 = vst.msk [vmem:[%s445] sm:$0xf] %vm139, %v444
        %s447 = sadd.s32 %s424, 64
        %s448 = scalar_lea.vmem %s114, %s447
        %v449 = vld [vmem:[%s448] sm:$0xf]
        %v450 = vld [vmem:[%s448 + $0x4] sm:$0xf]
        %v451 = vld [vmem:[%s448 + $0x8] sm:$0xf]
        %v452 = vld [vmem:[%s448 + $0xc] sm:$0xf]
        %454 = vrot.lane.b32.xlu0 %v450, 4
        %v455 = vpop.permute.xlu0 %454
        %458 = vrot.lane.b32.xlu0 %v451, 8
        %v459 = vpop.permute.xlu0 %458
        %462 = vrot.lane.b32.xlu0 %v452, 12
        %v463 = vpop.permute.xlu0 %462
        %v465 = vsel %vm133, %v449, %v455
        %v466 = vsel %vm135, %v465, %v459
        %v467 = vsel %vm137, %v466, %v463
        %469 = vrot.lane.b32.xlu0 %v467, 16
        %v470 = vpop.permute.xlu0 %469
        %472 = vst.msk [vmem:[%s445] sm:$0xf] %vm166, %v470
        %s473 = sadd.s32 %s424, 128
        %s474 = scalar_lea.vmem %s114, %s473
        %v475 = vld [vmem:[%s474] sm:$0xf]
        %v476 = vld [vmem:[%s474 + $0x4] sm:$0xf]
        %v477 = vld [vmem:[%s474 + $0x8] sm:$0xf]
        %v478 = vld [vmem:[%s474 + $0xc] sm:$0xf]
        %480 = vrot.lane.b32.xlu0 %v476, 4
        %v481 = vpop.permute.xlu0 %480
        %484 = vrot.lane.b32.xlu0 %v477, 8
        %v485 = vpop.permute.xlu0 %484
        %488 = vrot.lane.b32.xlu0 %v478, 12
        %v489 = vpop.permute.xlu0 %488
        %v491 = vsel %vm133, %v475, %v481
        %v492 = vsel %vm135, %v491, %v485
        %v493 = vsel %vm137, %v492, %v489
        %495 = vrot.lane.b32.xlu0 %v493, 32
        %v496 = vpop.permute.xlu0 %495
        %498 = vst.msk [vmem:[%s445] sm:$0xf] %vm193, %v496
        %s499 = sadd.s32 %s424, 192
        %s500 = scalar_lea.vmem %s114, %s499
        %v501 = vld [vmem:[%s500] sm:$0xf]
        %v502 = vld [vmem:[%s500 + $0x4] sm:$0xf]
        %v503 = vld [vmem:[%s500 + $0x8] sm:$0xf]
        %v504 = vld [vmem:[%s500 + $0xc] sm:$0xf]
        %506 = vrot.lane.b32.xlu0 %v502, 4
        %v507 = vpop.permute.xlu0 %506
        %510 = vrot.lane.b32.xlu0 %v503, 8
        %v511 = vpop.permute.xlu0 %510
        %514 = vrot.lane.b32.xlu0 %v504, 12
        %v515 = vpop.permute.xlu0 %514
        %v517 = vsel %vm133, %v501, %v507
        %v518 = vsel %vm135, %v517, %v511
        %v519 = vsel %vm137, %v518, %v515
        %521 = vrot.lane.b32.xlu0 %v519, 48
        %v522 = vpop.permute.xlu0 %521
        %524 = vst.msk [vmem:[%s445] sm:$0xf] %vm220, %v522
        %s525 = sand.u32 %s49, 1
        %s526 = scalar_lea.sflag [#allocation3], %s525
        %s527 = sand.u32 %s49, 1
        %s528 = smul.addr %s527, 16
        %s529 = scalar_lea.vmem [#allocation2], %s528
        // Predicated region
        $region25: #{tpu_custom_call.1} parent=23 // pred_check
          %p530 = pneg %p59
        $region26: #{tpu_custom_call.1} parent=23 // pred_check_branch
          %532 = sbr.rel (%p530) target = $region28
        $region27: #{tpu_custom_call.1} parent=23 // pred_region
          %s534 = ssub.s32 256, 256
          %535 = vsyncadd %s526, %s534
          %s536 = smul.addr %s15, 4
          %s537 = smul.addr %s536, 64
          %s538 = scalar_lea.hbm %s1, %s537
          %s539 = sshll.u32 %s529, 4
          %s540 = int_to_ptr.vmem [resolvable:$true] %s539
          %545 = dma.vmem_to_hbm [thread:$0]  %s540, 256, %s538, %s526, 64, 64, 4
        $region28: #{tpu_custom_call.1} parent=23 // pred_fallthru
          _
      $region24: #{tpu_custom_call.1} parent=5 // pred_fallthru
        _
      %p546 = scmp.le.s32.totalorder 2, %s10
      // Predicated region
      $region29: #{tpu_custom_call.1} parent=5 // pred_check
        %p547 = pneg %p546
      $region30: #{tpu_custom_call.1} parent=5 // pred_check_branch
        %549 = sbr.rel (%p547) target = $region32
      $region31: #{tpu_custom_call.1} parent=5 // pred_region
        %s550 = ssub.s32 %s10, 2
        // Predicated region
        $region33: #{tpu_custom_call.1} parent=31 // pred_check
          %p551 = pneg %p65
        $region34: #{tpu_custom_call.1} parent=31 // pred_check_branch
          %553 = sbr.rel (%p551) target = $region36
        $region35: #{tpu_custom_call.1} parent=31 // pred_region
          %s554 = sand.u32 %s50, 1
          %s555 = scalar_lea.sflag [#allocation3], %s554
          %s556 = sand.u32 %s50, 1
          %s557 = smul.addr %s556, 16
          %s558 = scalar_lea.vmem [#allocation2], %s557
          %559 = dma.done %s555, 256
        $region36: #{tpu_custom_call.1} parent=31 // pred_fallthru
          _
      $region32: #{tpu_custom_call.1} parent=5 // pred_fallthru
        _
    $region6: #{tpu_custom_call.1} parent=1 // loop_footer
      %s14 = sadd.s32 1, %s10
    $region7: #{tpu_custom_call.1} parent=1 // loop_footer_branch
      %9 = sbr.rel target = $region3
    $region8: #{tpu_custom_call.1} parent=1 // loop_exit
      _
    %560 = vsyncpa [#allocation3], 1
    %s561 = scalar_lea.sflag [#allocation3], 1
    %562 = vsyncpa %s561, 1

</llo_original>
